<compile_context>
chip_gen: v5e
topology: v5e:2x2
jax: 0.10.0
libtpu: 0.0.40
codegen_flags: <defaults>
</compile_context>

<pallas_src>
import jax
import jax.numpy as jnp
from jax.experimental import pallas as pl
from jax.experimental.pallas import tpu as pltpu


def _make_kernel(kernel_size, c_in, c_out, seq_len, b_blk, compute_dtype):
    def kernel(x_ref, m_ref, w_ref, b_ref, o_ref, taps_ref):
        # x_ref:    (B_blk, C_in, L)     compute_dtype
        # m_ref:    (B_blk, L, L)        compute_dtype
        # w_ref:    (C_out, K*C_in)      compute_dtype
        # b_ref:    (C_out, 1)           f32
        # o_ref:    (C_out, B_blk*L)     out dtype (lane-dense packed output)
        # taps_ref: (K*C_in, B_blk*L)    compute_dtype VMEM scratch
        for b in range(b_blk):                      # static unroll (small B_blk)
            y = x_ref[b]                            # (C_in, L)
            adj = m_ref[b]                          # (L, L)
            lo, hi = b * seq_len, (b + 1) * seq_len
            taps_ref[0:c_in, lo:hi] = y
            for i in range(1, kernel_size):
                # Chain matmul on the MXU; f32 accumulation, rounded to the
                # compute dtype for the next tap / the fused conv matmul.
                y = jnp.dot(
                    y, adj, preferred_element_type=jnp.float32
                ).astype(compute_dtype)
                taps_ref[i * c_in:(i + 1) * c_in, lo:hi] = y
        # Single fused 1x1-conv matmul over the whole batch block:
        #   (C_out, K*C_in) @ (K*C_in, B_blk*L) -> (C_out, B_blk*L)
        acc = jnp.dot(w_ref[...], taps_ref[...],
                      preferred_element_type=jnp.float32)
        o_ref[...] = (acc + b_ref[...]).astype(o_ref.dtype)

    return kernel


def _pick_batch_block(n, seq_len):
    """Batch elements packed per grid step (lane axis gets B_blk*L columns)."""
    # Target a lane-dense (>= ~512 lane) packed output, keep the unrolled
    # per-element chain loop modest, and leave >= 2 grid steps when possible so
    # v7x can shard steps across its two TensorCores.
    b_blk = max(1, min(512 // max(seq_len, 1), 16))
    b_blk = min(b_blk, n)
    if n >= 2:
        b_blk = min(b_blk, max(1, n // 2))
    return max(b_blk, 1)


def tree_convolution(x, m, weight, bias, kernel_size,
                     *, compute_dtype=jnp.bfloat16, batch_block=None):
    """x: (N, C_in, L), m: (N, L, L), weight: (C_out, K*C_in), bias: (C_out,)."""
    n, c_in, seq_len = x.shape
    c_out = weight.shape[0]
    assert weight.shape == (c_out, kernel_size * c_in)
    assert m.shape == (n, seq_len, seq_len)
    out_dtype = x.dtype

    b_blk = batch_block or _pick_batch_block(n, seq_len)
    n_blocks = pl.cdiv(n, b_blk)
    n_pad = n_blocks * b_blk
    if n_pad != n:
        x = jnp.pad(x, ((0, n_pad - n), (0, 0), (0, 0)))
        m = jnp.pad(m, ((0, n_pad - n), (0, 0), (0, 0)))

    # bf16 streaming/compute by default: adjacency entries (0/1) stay exact,
    # accumulation is f32 inside the kernel.
    x_c = x.astype(compute_dtype)
    m_c = m.astype(compute_dtype)
    w_c = weight.astype(compute_dtype)
    if bias is None:
        bias = jnp.zeros((c_out,), jnp.float32)
    b2d = bias.astype(jnp.float32).reshape(c_out, 1)

    # Explicit VMEM budget: double-buffered x/m/out tiles + weights + scratch.
    isz = jnp.dtype(compute_dtype).itemsize
    osz = jnp.dtype(out_dtype).itemsize
    tiles = (2 * b_blk * c_in * seq_len * isz            # x (double buffered)
             + 2 * b_blk * seq_len * seq_len * isz       # m (double buffered)
             + 2 * c_out * b_blk * seq_len * osz         # out (double buffered)
             + c_out * kernel_size * c_in * isz + c_out * 4
             + kernel_size * c_in * b_blk * seq_len * isz)   # taps scratch
    vmem_limit = int(min(max(2 * tiles, 4 << 20), 64 << 20))

    out = pl.pallas_call(
        _make_kernel(kernel_size, c_in, c_out, seq_len, b_blk, compute_dtype),
        out_shape=jax.ShapeDtypeStruct((n_blocks, c_out, b_blk * seq_len),
                                       out_dtype),
        grid=(n_blocks,),
        in_specs=[
            pl.BlockSpec((b_blk, c_in, seq_len), lambda i: (i, 0, 0)),
            pl.BlockSpec((b_blk, seq_len, seq_len), lambda i: (i, 0, 0)),
            pl.BlockSpec((c_out, kernel_size * c_in), lambda i: (0, 0)),
            pl.BlockSpec((c_out, 1), lambda i: (0, 0)),
        ],
        out_specs=pl.BlockSpec((None, c_out, b_blk * seq_len),
                               lambda i: (i, 0, 0)),
        scratch_shapes=[
            pltpu.VMEM((kernel_size * c_in, b_blk * seq_len), compute_dtype)],
        compiler_params=pltpu.CompilerParams(
            dimension_semantics=("parallel",),
            vmem_limit_bytes=vmem_limit),
    )(x_c, m_c, w_c, b2d)

    # Un-pack the lane-dense packed output back to (N, C_out, L).
    out = out.reshape(n_blocks, c_out, b_blk, seq_len)
    out = out.transpose(0, 2, 1, 3).reshape(n_pad, c_out, seq_len)
    return out[:n]


def tree_convolution_ref(x, m, weight, bias, kernel_size):
    """Pure-JAX reference mirroring the PyTorch forward."""
    taps = [x]
    y = x
    for _ in range(kernel_size - 1):
        y = jnp.einsum("ncl,nlk->nck", y, m)
        taps.append(y)
    cat = jnp.concatenate(taps, axis=1)                  # (N, K*C_in, L)
    out = jnp.einsum("oc,ncl->nol", weight, cat)
    if bias is not None:
        out = out + bias[None, :, None]
    return out


if __name__ == "__main__":
    # Small, module-consistent shapes (exercises B_blk=4 batching and grid=2).
    N, C_IN, C_OUT, L, K = 8, 8, 16, 16, 3

    key = jax.random.PRNGKey(0)
    kx, km, kw, kb = jax.random.split(key, 4)

    x = jax.random.normal(kx, (N, C_IN, L), dtype=jnp.float32)
    # Dense 0/1 adjacency. TODO(synk): torch allows a sparse adjacency (sparse
    # bmm); there is no sparse-matmul Pallas primitive, so it is densified.
    m = (jax.random.uniform(km, (N, L, L)) > 0.8).astype(jnp.float32)

    fan_in = K * C_IN
    weight = jax.random.normal(kw, (C_OUT, fan_in), dtype=jnp.float32) / jnp.sqrt(
        jnp.float32(fan_in))
    bias = jax.random.normal(kb, (C_OUT,), dtype=jnp.float32) * 0.1

    ref = tree_convolution_ref(x, m, weight, bias, K)

    # Exact-semantics check: f32 compute path must match tightly.
    out_f32 = jax.block_until_ready(
        tree_convolution(x, m, weight, bias, K, compute_dtype=jnp.float32))
    assert out_f32.shape == (N, C_OUT, L)
    assert jnp.allclose(out_f32, ref, atol=1e-4, rtol=1e-4), "f32 mismatch"

    # Production bf16 path: adjacency exact in bf16, activations/weights rounded
    # to bf16 (f32 accumulation) -> looser tolerance, per review note.
    out_bf16 = jax.block_until_ready(
        tree_convolution(x, m, weight, bias, K, compute_dtype=jnp.bfloat16))
    assert out_bf16.shape == (N, C_OUT, L)
    assert jnp.allclose(out_bf16, ref, atol=1e-1, rtol=5e-2), "bf16 mismatch"

    print("KERNEL_OK")
</pallas_src>

<mosaic_0001>
module attributes {stable_mosaic.version = 11 : i64} {
  func.func @kernel(%arg0: i32, %arg1: memref<4x8x16xf32, #tpu.memory_space<vmem>>, %arg2: memref<4x16x16xf32, #tpu.memory_space<vmem>>, %arg3: memref<16x24xf32, #tpu.memory_space<vmem>>, %arg4: memref<16x1xf32, #tpu.memory_space<vmem>>, %arg5: memref<1x16x64xf32, #tpu.memory_space<vmem>>, %arg6: memref<24x64xf32, #tpu.memory_space<vmem>>) attributes {dimension_semantics = [#tpu.dimension_semantics<parallel>], iteration_bounds = array<i64: 2>, scalar_prefetch = 0 : i64, scratch_operands = 1 : i64, tpu.core_type = #tpu.core_type<tc>, window_params = [{transform_indices = @transform_0, window_bounds = array<i64: 4, 8, 16>}, {transform_indices = @transform_1, window_bounds = array<i64: 4, 16, 16>}, {pipeline_mode = #tpu.pipeline_mode<synchronous>, transform_indices = @transform_2, window_bounds = array<i64: 16, 24>}, {pipeline_mode = #tpu.pipeline_mode<synchronous>, transform_indices = @transform_3, window_bounds = array<i64: 16, 1>}, {transform_indices = @transform_4, window_bounds = array<i64: 1, 16, 64>}]} {
    %c0 = arith.constant 0 : index
    %c0_0 = arith.constant 0 : index
    %c0_1 = arith.constant 0 : index
    %0 = vector.load %arg1[%c0, %c0_0, %c0_1] : memref<4x8x16xf32, #tpu.memory_space<vmem>>, vector<1x8x16xf32>
    %1 = vector.shape_cast %0 : vector<1x8x16xf32> to vector<8x16xf32>
    %c0_2 = arith.constant 0 : index
    %c0_3 = arith.constant 0 : index
    %c0_4 = arith.constant 0 : index
    %2 = vector.load %arg2[%c0_2, %c0_3, %c0_4] : memref<4x16x16xf32, #tpu.memory_space<vmem>>, vector<1x16x16xf32>
    %3 = vector.shape_cast %2 : vector<1x16x16xf32> to vector<16x16xf32>
    %c0_5 = arith.constant 0 : index
    %c0_6 = arith.constant 0 : index
    %4 = vector.load %arg6[%c0_5, %c0_6] : memref<24x64xf32, #tpu.memory_space<vmem>>, vector<8x16xf32>
    tpu.vector_store %arg6[%c0_5, %c0_6], %1 {strides = array<i32>} : memref<24x64xf32, #tpu.memory_space<vmem>>, vector<8x16xf32>,
    %cst = arith.constant dense<0.000000e+00> : vector<8x16xf32>
    %5 = tpu.matmul %1, %3, %cst {dimension_numbers = #tpu.dot_dimension_numbers<[1], [0], [0], [1], [0, 0, 1, 1], [], []>} : vector<8x16xf32>, vector<16x16xf32>, vector<8x16xf32> -> vector<8x16xf32>
    %c8 = arith.constant 8 : index
    %c0_7 = arith.constant 0 : index
    %6 = vector.load %arg6[%c8, %c0_7] : memref<24x64xf32, #tpu.memory_space<vmem>>, vector<8x16xf32>
    tpu.vector_store %arg6[%c8, %c0_7], %5 {strides = array<i32>} : memref<24x64xf32, #tpu.memory_space<vmem>>, vector<8x16xf32>,
    %cst_8 = arith.constant dense<0.000000e+00> : vector<8x16xf32>
    %7 = tpu.matmul %5, %3, %cst_8 {dimension_numbers = #tpu.dot_dimension_numbers<[1], [0], [0], [1], [0, 0, 1, 1], [], []>} : vector<8x16xf32>, vector<16x16xf32>, vector<8x16xf32> -> vector<8x16xf32>
    %c16 = arith.constant 16 : index
    %c0_9 = arith.constant 0 : index
    %8 = vector.load %arg6[%c16, %c0_9] : memref<24x64xf32, #tpu.memory_space<vmem>>, vector<8x16xf32>
    tpu.vector_store %arg6[%c16, %c0_9], %7 {strides = array<i32>} : memref<24x64xf32, #tpu.memory_space<vmem>>, vector<8x16xf32>,
    %c1 = arith.constant 1 : index
    %c0_10 = arith.constant 0 : index
    %c0_11 = arith.constant 0 : index
    %9 = vector.load %arg1[%c1, %c0_10, %c0_11] : memref<4x8x16xf32, #tpu.memory_space<vmem>>, vector<1x8x16xf32>
    %10 = vector.shape_cast %9 : vector<1x8x16xf32> to vector<8x16xf32>
    %c1_12 = arith.constant 1 : index
    %c0_13 = arith.constant 0 : index
    %c0_14 = arith.constant 0 : index
    %11 = vector.load %arg2[%c1_12, %c0_13, %c0_14] : memref<4x16x16xf32, #tpu.memory_space<vmem>>, vector<1x16x16xf32>
    %12 = vector.shape_cast %11 : vector<1x16x16xf32> to vector<16x16xf32>
    %c0_15 = arith.constant 0 : index
    %c16_16 = arith.constant 16 : index
    %13 = vector.load %arg6[%c0_15, %c16_16] : memref<24x64xf32, #tpu.memory_space<vmem>>, vector<8x16xf32>
    tpu.vector_store %arg6[%c0_15, %c16_16], %10 {strides = array<i32>} : memref<24x64xf32, #tpu.memory_space<vmem>>, vector<8x16xf32>,
    %cst_17 = arith.constant dense<0.000000e+00> : vector<8x16xf32>
    %14 = tpu.matmul %10, %12, %cst_17 {dimension_numbers = #tpu.dot_dimension_numbers<[1], [0], [0], [1], [0, 0, 1, 1], [], []>} : vector<8x16xf32>, vector<16x16xf32>, vector<8x16xf32> -> vector<8x16xf32>
    %c8_18 = arith.constant 8 : index
    %c16_19 = arith.constant 16 : index
    %15 = vector.load %arg6[%c8_18, %c16_19] : memref<24x64xf32, #tpu.memory_space<vmem>>, vector<8x16xf32>
    tpu.vector_store %arg6[%c8_18, %c16_19], %14 {strides = array<i32>} : memref<24x64xf32, #tpu.memory_space<vmem>>, vector<8x16xf32>,
    %cst_20 = arith.constant dense<0.000000e+00> : vector<8x16xf32>
    %16 = tpu.matmul %14, %12, %cst_20 {dimension_numbers = #tpu.dot_dimension_numbers<[1], [0], [0], [1], [0, 0, 1, 1], [], []>} : vector<8x16xf32>, vector<16x16xf32>, vector<8x16xf32> -> vector<8x16xf32>
    %c16_21 = arith.constant 16 : index
    %c16_22 = arith.constant 16 : index
    %17 = vector.load %arg6[%c16_21, %c16_22] : memref<24x64xf32, #tpu.memory_space<vmem>>, vector<8x16xf32>
    tpu.vector_store %arg6[%c16_21, %c16_22], %16 {strides = array<i32>} : memref<24x64xf32, #tpu.memory_space<vmem>>, vector<8x16xf32>,
    %c2 = arith.constant 2 : index
    %c0_23 = arith.constant 0 : index
    %c0_24 = arith.constant 0 : index
    %18 = vector.load %arg1[%c2, %c0_23, %c0_24] : memref<4x8x16xf32, #tpu.memory_space<vmem>>, vector<1x8x16xf32>
    %19 = vector.shape_cast %18 : vector<1x8x16xf32> to vector<8x16xf32>
    %c2_25 = arith.constant 2 : index
    %c0_26 = arith.constant 0 : index
    %c0_27 = arith.constant 0 : index
    %20 = vector.load %arg2[%c2_25, %c0_26, %c0_27] : memref<4x16x16xf32, #tpu.memory_space<vmem>>, vector<1x16x16xf32>
    %21 = vector.shape_cast %20 : vector<1x16x16xf32> to vector<16x16xf32>
    %c0_28 = arith.constant 0 : index
    %c32 = arith.constant 32 : index
    %22 = vector.load %arg6[%c0_28, %c32] : memref<24x64xf32, #tpu.memory_space<vmem>>, vector<8x16xf32>
    tpu.vector_store %arg6[%c0_28, %c32], %19 {strides = array<i32>} : memref<24x64xf32, #tpu.memory_space<vmem>>, vector<8x16xf32>,
    %cst_29 = arith.constant dense<0.000000e+00> : vector<8x16xf32>
    %23 = tpu.matmul %19, %21, %cst_29 {dimension_numbers = #tpu.dot_dimension_numbers<[1], [0], [0], [1], [0, 0, 1, 1], [], []>} : vector<8x16xf32>, vector<16x16xf32>, vector<8x16xf32> -> vector<8x16xf32>
    %c8_30 = arith.constant 8 : index
    %c32_31 = arith.constant 32 : index
    %24 = vector.load %arg6[%c8_30, %c32_31] : memref<24x64xf32, #tpu.memory_space<vmem>>, vector<8x16xf32>
    tpu.vector_store %arg6[%c8_30, %c32_31], %23 {strides = array<i32>} : memref<24x64xf32, #tpu.memory_space<vmem>>, vector<8x16xf32>,
    %cst_32 = arith.constant dense<0.000000e+00> : vector<8x16xf32>
    %25 = tpu.matmul %23, %21, %cst_32 {dimension_numbers = #tpu.dot_dimension_numbers<[1], [0], [0], [1], [0, 0, 1, 1], [], []>} : vector<8x16xf32>, vector<16x16xf32>, vector<8x16xf32> -> vector<8x16xf32>
    %c16_33 = arith.constant 16 : index
    %c32_34 = arith.constant 32 : index
    %26 = vector.load %arg6[%c16_33, %c32_34] : memref<24x64xf32, #tpu.memory_space<vmem>>, vector<8x16xf32>
    tpu.vector_store %arg6[%c16_33, %c32_34], %25 {strides = array<i32>} : memref<24x64xf32, #tpu.memory_space<vmem>>, vector<8x16xf32>,
    %c3 = arith.constant 3 : index
    %c0_35 = arith.constant 0 : index
    %c0_36 = arith.constant 0 : index
    %27 = vector.load %arg1[%c3, %c0_35, %c0_36] : memref<4x8x16xf32, #tpu.memory_space<vmem>>, vector<1x8x16xf32>
    %28 = vector.shape_cast %27 : vector<1x8x16xf32> to vector<8x16xf32>
    %c3_37 = arith.constant 3 : index
    %c0_38 = arith.constant 0 : index
    %c0_39 = arith.constant 0 : index
    %29 = vector.load %arg2[%c3_37, %c0_38, %c0_39] : memref<4x16x16xf32, #tpu.memory_space<vmem>>, vector<1x16x16xf32>
    %30 = vector.shape_cast %29 : vector<1x16x16xf32> to vector<16x16xf32>
    %c0_40 = arith.constant 0 : index
    %c48 = arith.constant 48 : index
    %31 = vector.load %arg6[%c0_40, %c48] : memref<24x64xf32, #tpu.memory_space<vmem>>, vector<8x16xf32>
    tpu.vector_store %arg6[%c0_40, %c48], %28 {strides = array<i32>} : memref<24x64xf32, #tpu.memory_space<vmem>>, vector<8x16xf32>,
    %cst_41 = arith.constant dense<0.000000e+00> : vector<8x16xf32>
    %32 = tpu.matmul %28, %30, %cst_41 {dimension_numbers = #tpu.dot_dimension_numbers<[1], [0], [0], [1], [0, 0, 1, 1], [], []>} : vector<8x16xf32>, vector<16x16xf32>, vector<8x16xf32> -> vector<8x16xf32>
    %c8_42 = arith.constant 8 : index
    %c48_43 = arith.constant 48 : index
    %33 = vector.load %arg6[%c8_42, %c48_43] : memref<24x64xf32, #tpu.memory_space<vmem>>, vector<8x16xf32>
    tpu.vector_store %arg6[%c8_42, %c48_43], %32 {strides = array<i32>} : memref<24x64xf32, #tpu.memory_space<vmem>>, vector<8x16xf32>,
    %cst_44 = arith.constant dense<0.000000e+00> : vector<8x16xf32>
    %34 = tpu.matmul %32, %30, %cst_44 {dimension_numbers = #tpu.dot_dimension_numbers<[1], [0], [0], [1], [0, 0, 1, 1], [], []>} : vector<8x16xf32>, vector<16x16xf32>, vector<8x16xf32> -> vector<8x16xf32>
    %c16_45 = arith.constant 16 : index
    %c48_46 = arith.constant 48 : index
    %35 = vector.load %arg6[%c16_45, %c48_46] : memref<24x64xf32, #tpu.memory_space<vmem>>, vector<8x16xf32>
    tpu.vector_store %arg6[%c16_45, %c48_46], %34 {strides = array<i32>} : memref<24x64xf32, #tpu.memory_space<vmem>>, vector<8x16xf32>,
    %c0_47 = arith.constant 0 : index
    %c0_48 = arith.constant 0 : index
    %36 = vector.load %arg3[%c0_47, %c0_48] : memref<16x24xf32, #tpu.memory_space<vmem>>, vector<16x24xf32>
    %c0_49 = arith.constant 0 : index
    %c0_50 = arith.constant 0 : index
    %37 = vector.load %arg6[%c0_49, %c0_50] : memref<24x64xf32, #tpu.memory_space<vmem>>, vector<24x64xf32>
    %cst_51 = arith.constant dense<0.000000e+00> : vector<16x64xf32>
    %38 = tpu.matmul %36, %37, %cst_51 {dimension_numbers = #tpu.dot_dimension_numbers<[1], [0], [0], [1], [0, 0, 1, 1], [], []>} : vector<16x24xf32>, vector<24x64xf32>, vector<16x64xf32> -> vector<16x64xf32>
    %c0_52 = arith.constant 0 : index
    %c0_53 = arith.constant 0 : index
    %39 = vector.load %arg4[%c0_52, %c0_53] : memref<16x1xf32, #tpu.memory_space<vmem>>, vector<16x1xf32>
    %40 = vector.broadcast %39 : vector<16x1xf32> to vector<16x64xf32>
    %41 = arith.addf %38, %40 : vector<16x64xf32>
    %c0_54 = arith.constant 0 : index
    %c0_55 = arith.constant 0 : index
    %c0_56 = arith.constant 0 : index
    %42 = vector.load %arg5[%c0_54, %c0_55, %c0_56] : memref<1x16x64xf32, #tpu.memory_space<vmem>>, vector<1x16x64xf32>
    %43 = vector.shape_cast %42 : vector<1x16x64xf32> to vector<16x64xf32>
    %44 = vector.shape_cast %41 : vector<16x64xf32> to vector<1x16x64xf32>
    tpu.vector_store %arg5[%c0_54, %c0_55, %c0_56], %44 {strides = array<i32>} : memref<1x16x64xf32, #tpu.memory_space<vmem>>, vector<1x16x64xf32>,
    return
  }
  func.func @transform_0(%arg0: i32) -> (i32, i32, i32) {
    %c0_i32 = arith.constant 0 : i32
    %c0_i32_0 = arith.constant 0 : i32
    %c0_i32_1 = arith.constant 0 : i32
    return %arg0, %c0_i32, %c0_i32_0 : i32, i32, i32
  }
  func.func @transform_1(%arg0: i32) -> (i32, i32, i32) {
    %c0_i32 = arith.constant 0 : i32
    %c0_i32_0 = arith.constant 0 : i32
    %c0_i32_1 = arith.constant 0 : i32
    return %arg0, %c0_i32, %c0_i32_0 : i32, i32, i32
  }
  func.func @transform_2(%arg0: i32) -> (i32, i32) {
    %c0_i32 = arith.constant 0 : i32
    %c0_i32_0 = arith.constant 0 : i32
    %c0_i32_1 = arith.constant 0 : i32
    return %c0_i32, %c0_i32_0 : i32, i32
  }
  func.func @transform_3(%arg0: i32) -> (i32, i32) {
    %c0_i32 = arith.constant 0 : i32
    %c0_i32_0 = arith.constant 0 : i32
    %c0_i32_1 = arith.constant 0 : i32
    return %c0_i32, %c0_i32_0 : i32, i32
  }
  func.func @transform_4(%arg0: i32) -> (i32, i32, i32) {
    %c0_i32 = arith.constant 0 : i32
    %c0_i32_0 = arith.constant 0 : i32
    %c0_i32_1 = arith.constant 0 : i32
    return %arg0, %c0_i32, %c0_i32_0 : i32, i32, i32
  }
}

</mosaic_0001>

<llo_original>
// kernel: tpu_custom_call.1
$region0: #{tpu_custom_call.1}
  #allocation0 [shape = 'u32[]', space=smem, size = 0x4, offset = 0x4, fixed_abs, tag = 'smem constant byte address 0x4 - core index']
  #allocation1 [shape = 'u32[72,128]{1,0:T(1,128)}', space=vmem, size = 0x9000, scoped, tag = 'internal scratch']
  #allocation2 [shape = 'f32[24,64]{1,0:T(8,128)}', space=vmem, size = 0x3000, scoped, tag = 'scratch operand']
  %s0 = inlined_call_operand.hbm [shape: f32[8,8,16], index: 0, kind: input, shape index: {}]
  %s1 = inlined_call_operand.hbm [shape: f32[8,16,16], index: 1, kind: input, shape index: {}]
  %s2 = inlined_call_operand.vmem [shape: f32[16,24], index: 2, kind: input, shape index: {}]
  %s3 = inlined_call_operand.vmem [shape: f32[16,1], index: 3, kind: input, shape index: {}]
  %s4 = inlined_call_operand.hbm [shape: f32[2,16,64], index: 4, kind: output, shape index: {}]
  %s5 = sld [smem:[#allocation0]]
  $region57: #{tpu_custom_call.1} parent=0
    _
  %s7 = ssub.s32 1, %s5
  %s8 = scalar_select 0, %s7, %s5
  $region1: #{tpu_custom_call.1} parent=0
    #allocation3 [shape = 'u8[32768]{0}', space=vmem, size = 0x8000, scoped, tag = 'input window, operand 0']
    #allocation4 [shape = 's32[2]{0}', space=sflag, size = 0x8, scoped, tag = 'scoped memory for tpu_custom_call.1']
    #allocation5 [shape = 's32[2]{0}', space=sflag, size = 0x8, scoped, tag = 'scoped memory for tpu_custom_call.1']
    #allocation6 [shape = 'u8[65536]{0}', space=vmem, size = 0x10000, scoped, tag = 'input window, operand 1']
    #allocation7 [shape = 's32[2]{0}', space=sflag, size = 0x8, scoped, tag = 'scoped memory for tpu_custom_call.1']
    #allocation8 [shape = 'u8[16384]{0}', space=vmem, size = 0x4000, scoped, tag = 'output window, operand 0']
    %9 = vsyncpa [#allocation4], 0
    %s10 = scalar_lea.sflag [#allocation4], 1
    %11 = vsyncpa %s10, 0
    %12 = vsyncpa [#allocation7], 0
    %s13 = scalar_lea.sflag [#allocation7], 1
    %14 = vsyncpa %s13, 0
    %15 = vsyncpa [#allocation5], 0
    %s16 = scalar_lea.sflag [#allocation5], 1
    %17 = vsyncpa %s16, 0
    loop: start=0, step=1, limit=4
    $region2: #{tpu_custom_call.1} parent=1 // loop_pre_header
      _
    $region3: #{tpu_custom_call.1} parent=1 // loop_header
      %s19 = sphi 0, %s23
      %p20 = scmp.ge.s32.totalorder %s19, 4
      %s29 = sphi 0, %s31
      %s32 = sphi 0, %s29
      %s33 = sphi 0, %s32
      %s49 = sphi 0, %s33
      %s55 = sphi 0, %s57
      %s58 = sphi 0, %s55
      %s59 = sphi 0, %s58
      %s75 = sphi 0, %s59
      %s79 = sphi 0, %s79
      %s81 = sphi 0, %s79
      %s82 = sphi 0, %s81
      %s96 = sphi 0, %s82
      %s100 = sphi 0, %s100
      %s102 = sphi 0, %s100
      %s103 = sphi 0, %s102
      %s117 = sphi 0, %s103
      %s123 = sphi 0, %s125
      %s126 = sphi 0, %s123
      %s127 = sphi 0, %s126
      %s143 = sphi 0, %s127
    $region4: #{tpu_custom_call.1} parent=1 // loop_header_branch
      %22 = sbr.rel (%p20) target = $region8
    $region5: #{tpu_custom_call.1} parent=1 // loop_body
      %s24 = ssub.s32 %s19, 1
      %s25 = ssub.s32 %s19, 2
      %s26 = sadd.s32 %s19, 1
      %s27 = ssub.s32 %s19, %s26
      %p28 = scmp.eq.s32.totalorder %s27, 0
      %s30 = sadd.s32 %s29, 1
      %s31 = scalar_select %p28, %s29, %s30
      %p34 = pneg %p28
      %p35 = scmp.eq.s32.totalorder %s19, 1
      %p36 = por %p34, %p35
      %p37 = scmp.ne.s32.totalorder %s29, %s32
      %p38 = scmp.eq.s32.totalorder %s19, 0
      %p39 = por %p37, %p38
      %p40 = scmp.ne.s32.totalorder %s29, %s32
      %p41 = scmp.eq.s32.totalorder %s24, 1
      %p42 = por %p40, %p41
      %p43 = scmp.ne.s32.totalorder %s32, %s33
      %p44 = scmp.eq.s32.totalorder %s24, 0
      %p45 = por %p43, %p44
      %p46 = scmp.ne.s32.totalorder %s32, %s33
      %p47 = scmp.eq.s32.totalorder %s25, 1
      %p48 = por %p46, %p47
      %p50 = scmp.ne.s32.totalorder %s33, %s49
      %p51 = scmp.eq.s32.totalorder %s25, 0
      %p52 = por %p50, %p51
      %s53 = ssub.s32 %s19, %s26
      %p54 = scmp.eq.s32.totalorder %s53, 0
      %s56 = sadd.s32 %s55, 1
      %s57 = scalar_select %p54, %s55, %s56
      %p60 = pneg %p54
      %p61 = scmp.eq.s32.totalorder %s19, 1
      %p62 = por %p60, %p61
      %p63 = scmp.ne.s32.totalorder %s55, %s58
      %p64 = scmp.eq.s32.totalorder %s19, 0
      %p65 = por %p63, %p64
      %p66 = scmp.ne.s32.totalorder %s55, %s58
      %p67 = scmp.eq.s32.totalorder %s24, 1
      %p68 = por %p66, %p67
      %p69 = scmp.ne.s32.totalorder %s58, %s59
      %p70 = scmp.eq.s32.totalorder %s24, 0
      %p71 = por %p69, %p70
      %p72 = scmp.ne.s32.totalorder %s58, %s59
      %p73 = scmp.eq.s32.totalorder %s25, 1
      %p74 = por %p72, %p73
      %p76 = scmp.ne.s32.totalorder %s59, %s75
      %p77 = scmp.eq.s32.totalorder %s25, 0
      %p78 = por %p76, %p77
      %s80 = sadd.s32 %s79, 1
      %p83 = scmp.eq.s32.totalorder %s19, 1
      %p84 = scmp.ne.s32.totalorder %s79, %s81
      %p85 = scmp.eq.s32.totalorder %s19, 0
      %p86 = por %p84, %p85
      %p87 = scmp.ne.s32.totalorder %s79, %s81
      %p88 = scmp.eq.s32.totalorder %s24, 1
      %p89 = por %p87, %p88
      %p90 = scmp.ne.s32.totalorder %s81, %s82
      %p91 = scmp.eq.s32.totalorder %s24, 0
      %p92 = por %p90, %p91
      %p93 = scmp.ne.s32.totalorder %s81, %s82
      %p94 = scmp.eq.s32.totalorder %s25, 1
      %p95 = por %p93, %p94
      %p97 = scmp.ne.s32.totalorder %s82, %s96
      %p98 = scmp.eq.s32.totalorder %s25, 0
      %p99 = por %p97, %p98
      %s101 = sadd.s32 %s100, 1
      %p104 = scmp.eq.s32.totalorder %s19, 1
      %p105 = scmp.ne.s32.totalorder %s100, %s102
      %p106 = scmp.eq.s32.totalorder %s19, 0
      %p107 = por %p105, %p106
      %p108 = scmp.ne.s32.totalorder %s100, %s102
      %p109 = scmp.eq.s32.totalorder %s24, 1
      %p110 = por %p108, %p109
      %p111 = scmp.ne.s32.totalorder %s102, %s103
      %p112 = scmp.eq.s32.totalorder %s24, 0
      %p113 = por %p111, %p112
      %p114 = scmp.ne.s32.totalorder %s102, %s103
      %p115 = scmp.eq.s32.totalorder %s25, 1
      %p116 = por %p114, %p115
      %p118 = scmp.ne.s32.totalorder %s103, %s117
      %p119 = scmp.eq.s32.totalorder %s25, 0
      %p120 = por %p118, %p119
      %s121 = ssub.s32 %s19, %s26
      %p122 = scmp.eq.s32.totalorder %s121, 0
      %s124 = sadd.s32 %s123, 1
      %s125 = scalar_select %p122, %s123, %s124
      %p128 = pneg %p122
      %p129 = scmp.eq.s32.totalorder %s19, 1
      %p130 = por %p128, %p129
      %p131 = scmp.ne.s32.totalorder %s123, %s126
      %p132 = scmp.eq.s32.totalorder %s19, 0
      %p133 = por %p131, %p132
      %p134 = scmp.ne.s32.totalorder %s123, %s126
      %p135 = scmp.eq.s32.totalorder %s24, 1
      %p136 = por %p134, %p135
      %p137 = scmp.ne.s32.totalorder %s126, %s127
      %p138 = scmp.eq.s32.totalorder %s24, 0
      %p139 = por %p137, %p138
      %p140 = scmp.ne.s32.totalorder %s126, %s127
      %p141 = scmp.eq.s32.totalorder %s25, 1
      %p142 = por %p140, %p141
      %p144 = scmp.ne.s32.totalorder %s127, %s143
      %p145 = scmp.eq.s32.totalorder %s25, 0
      %p146 = por %p144, %p145
      %p147 = scmp.le.s32.totalorder 1, %s19
      %p148 = scmp.lt.s32.totalorder %s19, 3
      %p149 = pnand %p147, %p148
      %p150 = pneg %p149
      // Predicated region
      $region9: #{tpu_custom_call.1} parent=5 // pred_check
        _
      $region10: #{tpu_custom_call.1} parent=5 // pred_check_branch
        %152 = sbr.rel (%p149) target = $region12
      $region11: #{tpu_custom_call.1} parent=5 // pred_region
        %s153 = ssub.s32 %s19, 1
        // Predicated region
        $region13: #{tpu_custom_call.1} parent=11 // pred_check
          %p154 = pneg %p92
        $region14: #{tpu_custom_call.1} parent=11 // pred_check_branch
          %156 = sbr.rel (%p154) target = $region16
        $region15: #{tpu_custom_call.1} parent=11 // pred_region
          _
        $region16: #{tpu_custom_call.1} parent=11 // pred_fallthru
          _
        // Predicated region
        $region17: #{tpu_custom_call.1} parent=11 // pred_check
          %p157 = pneg %p113
        $region18: #{tpu_custom_call.1} parent=11 // pred_check_branch
          %159 = sbr.rel (%p157) target = $region20
        $region19: #{tpu_custom_call.1} parent=11 // pred_region
          _
        $region20: #{tpu_custom_call.1} parent=11 // pred_fallthru
          _
      $region12: #{tpu_custom_call.1} parent=5 // pred_fallthru
        _
      %p160 = scmp.lt.s32.totalorder %s19, 2
      // Predicated region
      $region21: #{tpu_custom_call.1} parent=5 // pred_check
        %p161 = pneg %p160
      $region22: #{tpu_custom_call.1} parent=5 // pred_check_branch
        %163 = sbr.rel (%p161) target = $region24
      $region23: #{tpu_custom_call.1} parent=5 // pred_region
        // Predicated region
        $region25: #{tpu_custom_call.1} parent=23 // pred_check
          %p164 = pneg %p39
        $region26: #{tpu_custom_call.1} parent=23 // pred_check_branch
          %166 = sbr.rel (%p164) target = $region28
        $region27: #{tpu_custom_call.1} parent=23 // pred_region
          %s167 = sand.u32 %s29, 1
          %s168 = scalar_lea.sflag [#allocation4], %s167
          %s169 = sand.u32 %s29, 1
          %s170 = smul.addr %s169, 32
          %s171 = scalar_lea.vmem [#allocation3], %s170
          %s172 = smul.u32 4, %s19
          %174 = vsyncadd %s168, 0
          %s175 = smul.addr %s172, 8
          %s176 = scalar_lea.hbm %s0, %s175
          %s177 = sshll.u32 %s176, 4
          %s178 = int_to_ptr.hbm [resolvable:$true] %s177
          %s179 = sshll.u32 %s171, 4
          %s180 = int_to_ptr.vmem [resolvable:$true] %s179
          %185 = dma.hbm_to_vmem [thread:$0]  %s178, 512, %s180, %s168, 128, 128, 8
        $region28: #{tpu_custom_call.1} parent=23 // pred_fallthru
          _
        // Predicated region
        $region29: #{tpu_custom_call.1} parent=23 // pred_check
          %p186 = pneg %p65
        $region30: #{tpu_custom_call.1} parent=23 // pred_check_branch
          %188 = sbr.rel (%p186) target = $region32
        $region31: #{tpu_custom_call.1} parent=23 // pred_region
          %s189 = sand.u32 %s55, 1
          %s190 = scalar_lea.sflag [#allocation7], %s189
          %s191 = sand.u32 %s55, 1
          %s192 = smul.addr %s191, 64
          %s193 = scalar_lea.vmem [#allocation6], %s192
          %s194 = smul.u32 4, %s19
          %196 = vsyncadd %s190, 0
          %s197 = smul.addr %s194, 2
          %s198 = smul.addr %s197, 8
          %s199 = scalar_lea.hbm %s1, %s198
          %s200 = sshll.u32 %s199, 4
          %s201 = int_to_ptr.hbm [resolvable:$true] %s200
          %s202 = sshll.u32 %s193, 4
          %s203 = int_to_ptr.vmem [resolvable:$true] %s202
          %208 = dma.hbm_to_vmem [thread:$0]  %s201, 1024, %s203, %s190, 128, 128, 8
        $region32: #{tpu_custom_call.1} parent=23 // pred_fallthru
          _
      $region24: #{tpu_custom_call.1} parent=5 // pred_fallthru
        _
      %p209 = scmp.le.s32.totalorder 1, %s19
      %p210 = scmp.lt.s32.totalorder %s19, 3
      %p211 = pnand %p209, %p210
      %p212 = pneg %p211
      // Predicated region
      $region33: #{tpu_custom_call.1} parent=5 // pred_check
        _
      $region34: #{tpu_custom_call.1} parent=5 // pred_check_branch
        %214 = sbr.rel (%p211) target = $region36
      $region35: #{tpu_custom_call.1} parent=5 // pred_region
        %s215 = ssub.s32 %s19, 1
        %s216 = sand.u32 %s32, 1
        %s217 = scalar_lea.sflag [#allocation4], %s216
        %s218 = sand.u32 %s32, 1
        %s219 = smul.addr %s218, 32
        %s220 = scalar_lea.vmem [#allocation3], %s219
        // Predicated region
        $region37: #{tpu_custom_call.1} parent=35 // pred_check
          %p221 = pneg %p45
        $region38: #{tpu_custom_call.1} parent=35 // pred_check_branch
          %223 = sbr.rel (%p221) target = $region40
        $region39: #{tpu_custom_call.1} parent=35 // pred_region
          %225 = dma.done %s217, 512
        $region40: #{tpu_custom_call.1} parent=35 // pred_fallthru
          _
        %s226 = sand.u32 %s58, 1
        %s227 = scalar_lea.sflag [#allocation7], %s226
        %s228 = sand.u32 %s58, 1
        %s229 = smul.addr %s228, 64
        %s230 = scalar_lea.vmem [#allocation6], %s229
        // Predicated region
        $region41: #{tpu_custom_call.1} parent=35 // pred_check
          %p231 = pneg %p71
        $region42: #{tpu_custom_call.1} parent=35 // pred_check_branch
          %233 = sbr.rel (%p231) target = $region44
        $region43: #{tpu_custom_call.1} parent=35 // pred_region
          %235 = dma.done %s227, 1024
        $region44: #{tpu_custom_call.1} parent=35 // pred_fallthru
          _
        %s236 = sand.u32 %s32, 1
        %s237 = scalar_lea.sflag [#allocation4], %s236
        %s238 = sand.u32 %s32, 1
        %s239 = smul.addr %s238, 32
        %s240 = scalar_lea.vmem [#allocation3], %s239
        %p241 = pneg %p45
        %p242 = pneg %p42
        %s243 = sand.u32 %s58, 1
        %s244 = scalar_lea.sflag [#allocation7], %s243
        %s245 = sand.u32 %s58, 1
        %s246 = smul.addr %s245, 64
        %s247 = scalar_lea.vmem [#allocation6], %s246
        %p248 = pneg %p71
        %p249 = pneg %p68
        %p250 = pneg %p92
        %p251 = pneg %p89
        %p252 = pneg %p113
        %p253 = pneg %p110
        %p254 = pneg %p139
        %p255 = pneg %p136
        %s256 = sand.u32 %s126, 1
        %s257 = scalar_lea.sflag [#allocation5], %s256
        %s258 = sand.u32 %s126, 1
        %s259 = smul.addr %s258, 16
        %s260 = scalar_lea.vmem [#allocation8], %s259
        %s261 = smul.u32 4, %s24
        %s262 = smul.u32 4, %s24
        %v263 = vld [vmem:[%s220] sm:$0xff]
        %v264 = vld [vmem:[%s230] sm:$0xff]
        %v265 = vld [vmem:[%s230 + $0x8] sm:$0xff]
        %vm266 = vcmask 130048
        %267 = vst.msk [vmem:[#allocation2] sm:$0xff] %vm266, %v263
        %v269 = vsel %vm266, %v263, 0
        %271 = vmatpush.msra.mxu0 0.0
        %272 = vmatpush.msra.mxu0 0.0
        %273 = vmatpush.msra.mxu0 0.0
        %274 = vmatpush.msra.mxu0 0.0
        %275 = vmatpush.msra.mxu0 0.0
        %276 = vmatpush.msra.mxu0 0.0
        %277 = vmatpush.msra.mxu0 0.0
        %278 = vmatpush.msra.mxu0 0.0
        %279 = vmatpush.msra.mxu0 0.0
        %280 = vmatpush.msra.mxu0 0.0
        %281 = vmatpush.msra.mxu0 0.0
        %282 = vmatpush.msra.mxu0 0.0
        %283 = vmatpush.msra.mxu0 0.0
        %284 = vmatpush.msra.mxu0 0.0
        %285 = vmatpush.msra.mxu0 %v265
        %286 = vmatpush.msra.mxu0 %v264
        %287 = vmatmul.f32.gmra.mxu0 %v269
        %v288 = vpop.f32.mrf.mxu0
        %v289 = vadd.f32 0.0, %v288
        %290 = vdwg.mxu0
        %291 = vst.msk [vmem:[#allocation2 + $0x8] sm:$0xff] %vm266, %v289
        %v293 = vsel %vm266, %v289, 0
        %295 = vmatpush.msra.mxu0 0.0
        %296 = vmatpush.msra.mxu0 0.0
        %297 = vmatpush.msra.mxu0 0.0
        %298 = vmatpush.msra.mxu0 0.0
        %299 = vmatpush.msra.mxu0 0.0
        %300 = vmatpush.msra.mxu0 0.0
        %301 = vmatpush.msra.mxu0 0.0
        %302 = vmatpush.msra.mxu0 0.0
        %303 = vmatpush.msra.mxu0 0.0
        %304 = vmatpush.msra.mxu0 0.0
        %305 = vmatpush.msra.mxu0 0.0
        %306 = vmatpush.msra.mxu0 0.0
        %307 = vmatpush.msra.mxu0 0.0
        %308 = vmatpush.msra.mxu0 0.0
        %309 = vmatpush.msra.mxu0 %v265
        %310 = vmatpush.msra.mxu0 %v264
        %311 = vmatmul.f32.gmra.mxu0 %v293
        %v312 = vpop.f32.mrf.mxu0
        %v313 = vadd.f32 0.0, %v312
        %314 = vdwg.mxu0
        %315 = vst.msk [vmem:[#allocation2 + $0x10] sm:$0xff] %vm266, %v313
        %s316 = scalar_lea.vmem %s220, 8 [#allocation3]
        %v317 = vld [vmem:[%s316] sm:$0xff]
        %s318 = scalar_lea.vmem %s230, 16 [#allocation6]
        %v319 = vld [vmem:[%s318] sm:$0xff]
        %v320 = vld [vmem:[%s318 + $0x8] sm:$0xff]
        %322 = vrot.lane.b32.xlu0 %v317, 16
        %v323 = vpop.permute.xlu0 %322
        %vm325 = vcmask 261248
        %326 = vst.msk [vmem:[#allocation2] sm:$0xff] %vm325, %v323
        %v327 = vsel %vm266, %v317, 0
        %329 = vmatpush.msra.mxu0 0.0
        %330 = vmatpush.msra.mxu0 0.0
        %331 = vmatpush.msra.mxu0 0.0
        %332 = vmatpush.msra.mxu0 0.0
        %333 = vmatpush.msra.mxu0 0.0
        %334 = vmatpush.msra.mxu0 0.0
        %335 = vmatpush.msra.mxu0 0.0
        %336 = vmatpush.msra.mxu0 0.0
        %337 = vmatpush.msra.mxu0 0.0
        %338 = vmatpush.msra.mxu0 0.0
        %339 = vmatpush.msra.mxu0 0.0
        %340 = vmatpush.msra.mxu0 0.0
        %341 = vmatpush.msra.mxu0 0.0
        %342 = vmatpush.msra.mxu0 0.0
        %343 = vmatpush.msra.mxu0 %v320
        %344 = vmatpush.msra.mxu0 %v319
        %345 = vmatmul.f32.gmra.mxu0 %v327
        %v346 = vpop.f32.mrf.mxu0
        %v347 = vadd.f32 0.0, %v346
        %348 = vdwg.mxu0
        %350 = vrot.lane.b32.xlu0 %v347, 16
        %v351 = vpop.permute.xlu0 %350
        %353 = vst.msk [vmem:[#allocation2 + $0x8] sm:$0xff] %vm325, %v351
        %v354 = vsel %vm266, %v347, 0
        %356 = vmatpush.msra.mxu0 0.0
        %357 = vmatpush.msra.mxu0 0.0
        %358 = vmatpush.msra.mxu0 0.0
        %359 = vmatpush.msra.mxu0 0.0
        %360 = vmatpush.msra.mxu0 0.0
        %361 = vmatpush.msra.mxu0 0.0
        %362 = vmatpush.msra.mxu0 0.0
        %363 = vmatpush.msra.mxu0 0.0
        %364 = vmatpush.msra.mxu0 0.0
        %365 = vmatpush.msra.mxu0 0.0
        %366 = vmatpush.msra.mxu0 0.0
        %367 = vmatpush.msra.mxu0 0.0
        %368 = vmatpush.msra.mxu0 0.0
        %369 = vmatpush.msra.mxu0 0.0
        %370 = vmatpush.msra.mxu0 %v320
        %371 = vmatpush.msra.mxu0 %v319
        %372 = vmatmul.f32.gmra.mxu0 %v354
        %v373 = vpop.f32.mrf.mxu0
        %v374 = vadd.f32 0.0, %v373
        %375 = vdwg.mxu0
        %377 = vrot.lane.b32.xlu0 %v374, 16
        %v378 = vpop.permute.xlu0 %377
        %380 = vst.msk [vmem:[#allocation2 + $0x10] sm:$0xff] %vm325, %v378
        %s381 = scalar_lea.vmem %s220, 16 [#allocation3]
        %v382 = vld [vmem:[%s381] sm:$0xff]
        %s383 = scalar_lea.vmem %s230, 32 [#allocation6]
        %v384 = vld [vmem:[%s383] sm:$0xff]
        %v385 = vld [vmem:[%s383 + $0x8] sm:$0xff]
        %387 = vrot.lane.b32.xlu0 %v382, 32
        %v388 = vpop.permute.xlu0 %387
        %vm390 = vcmask 392448
        %391 = vst.msk [vmem:[#allocation2] sm:$0xff] %vm390, %v388
        %v392 = vsel %vm266, %v382, 0
        %394 = vmatpush.msra.mxu0 0.0
        %395 = vmatpush.msra.mxu0 0.0
        %396 = vmatpush.msra.mxu0 0.0
        %397 = vmatpush.msra.mxu0 0.0
        %398 = vmatpush.msra.mxu0 0.0
        %399 = vmatpush.msra.mxu0 0.0
        %400 = vmatpush.msra.mxu0 0.0
        %401 = vmatpush.msra.mxu0 0.0
        %402 = vmatpush.msra.mxu0 0.0
        %403 = vmatpush.msra.mxu0 0.0
        %404 = vmatpush.msra.mxu0 0.0
        %405 = vmatpush.msra.mxu0 0.0
        %406 = vmatpush.msra.mxu0 0.0
        %407 = vmatpush.msra.mxu0 0.0
        %408 = vmatpush.msra.mxu0 %v385
        %409 = vmatpush.msra.mxu0 %v384
        %410 = vmatmul.f32.gmra.mxu0 %v392
        %v411 = vpop.f32.mrf.mxu0
        %v412 = vadd.f32 0.0, %v411
        %413 = vdwg.mxu0
        %415 = vrot.lane.b32.xlu0 %v412, 32
        %v416 = vpop.permute.xlu0 %415
        %418 = vst.msk [vmem:[#allocation2 + $0x8] sm:$0xff] %vm390, %v416
        %v419 = vsel %vm266, %v412, 0
        %421 = vmatpush.msra.mxu0 0.0
        %422 = vmatpush.msra.mxu0 0.0
        %423 = vmatpush.msra.mxu0 0.0
        %424 = vmatpush.msra.mxu0 0.0
        %425 = vmatpush.msra.mxu0 0.0
        %426 = vmatpush.msra.mxu0 0.0
        %427 = vmatpush.msra.mxu0 0.0
        %428 = vmatpush.msra.mxu0 0.0
        %429 = vmatpush.msra.mxu0 0.0
        %430 = vmatpush.msra.mxu0 0.0
        %431 = vmatpush.msra.mxu0 0.0
        %432 = vmatpush.msra.mxu0 0.0
        %433 = vmatpush.msra.mxu0 0.0
        %434 = vmatpush.msra.mxu0 0.0
        %435 = vmatpush.msra.mxu0 %v385
        %436 = vmatpush.msra.mxu0 %v384
        %437 = vmatmul.f32.gmra.mxu0 %v419
        %v438 = vpop.f32.mrf.mxu0
        %v439 = vadd.f32 0.0, %v438
        %440 = vdwg.mxu0
        %442 = vrot.lane.b32.xlu0 %v439, 32
        %v443 = vpop.permute.xlu0 %442
        %445 = vst.msk [vmem:[#allocation2 + $0x10] sm:$0xff] %vm390, %v443
        %s446 = scalar_lea.vmem %s220, 24 [#allocation3]
        %v447 = vld [vmem:[%s446] sm:$0xff]
        %s448 = scalar_lea.vmem %s230, 48 [#allocation6]
        %v449 = vld [vmem:[%s448] sm:$0xff]
        %v450 = vld [vmem:[%s448 + $0x8] sm:$0xff]
        %452 = vrot.lane.b32.xlu0 %v447, 48
        %v453 = vpop.permute.xlu0 %452
        %vm455 = vcmask 523648
        %456 = vst.msk [vmem:[#allocation2] sm:$0xff] %vm455, %v453
        %v457 = vsel %vm266, %v447, 0
        %459 = vmatpush.msra.mxu0 0.0
        %460 = vmatpush.msra.mxu0 0.0
        %461 = vmatpush.msra.mxu0 0.0
        %462 = vmatpush.msra.mxu0 0.0
        %463 = vmatpush.msra.mxu0 0.0
        %464 = vmatpush.msra.mxu0 0.0
        %465 = vmatpush.msra.mxu0 0.0
        %466 = vmatpush.msra.mxu0 0.0
        %467 = vmatpush.msra.mxu0 0.0
        %468 = vmatpush.msra.mxu0 0.0
        %469 = vmatpush.msra.mxu0 0.0
        %470 = vmatpush.msra.mxu0 0.0
        %471 = vmatpush.msra.mxu0 0.0
        %472 = vmatpush.msra.mxu0 0.0
        %473 = vmatpush.msra.mxu0 %v450
        %474 = vmatpush.msra.mxu0 %v449
        %475 = vmatmul.f32.gmra.mxu0 %v457
        %v476 = vpop.f32.mrf.mxu0
        %v477 = vadd.f32 0.0, %v476
        %478 = vdwg.mxu0
        %480 = vrot.lane.b32.xlu0 %v477, 48
        %v481 = vpop.permute.xlu0 %480
        %483 = vst.msk [vmem:[#allocation2 + $0x8] sm:$0xff] %vm455, %v481
        %v484 = vsel %vm266, %v477, 0
        %486 = vmatpush.msra.mxu0 0.0
        %487 = vmatpush.msra.mxu0 0.0
        %488 = vmatpush.msra.mxu0 0.0
        %489 = vmatpush.msra.mxu0 0.0
        %490 = vmatpush.msra.mxu0 0.0
        %491 = vmatpush.msra.mxu0 0.0
        %492 = vmatpush.msra.mxu0 0.0
        %493 = vmatpush.msra.mxu0 0.0
        %494 = vmatpush.msra.mxu0 0.0
        %495 = vmatpush.msra.mxu0 0.0
        %496 = vmatpush.msra.mxu0 0.0
        %497 = vmatpush.msra.mxu0 0.0
        %498 = vmatpush.msra.mxu0 0.0
        %499 = vmatpush.msra.mxu0 0.0
        %500 = vmatpush.msra.mxu0 %v450
        %501 = vmatpush.msra.mxu0 %v449
        %502 = vmatmul.f32.gmra.mxu0 %v484
        %v503 = vpop.f32.mrf.mxu0
        %v504 = vadd.f32 0.0, %v503
        %505 = vdwg.mxu0
        %507 = vrot.lane.b32.xlu0 %v504, 48
        %v508 = vpop.permute.xlu0 %507
        %510 = vst.msk [vmem:[#allocation2 + $0x10] sm:$0xff] %vm455, %v508
        %v511 = vld [vmem:[%s2] sm:$0xff]
        %v512 = vld [vmem:[%s2 + $0x8] sm:$0xff]
        %v513 = vld [vmem:[#allocation2] sm:$0xff]
        %v514 = vld [vmem:[#allocation2 + $0x8] sm:$0xff]
        %v515 = vld [vmem:[#allocation2 + $0x10] sm:$0xff]
        %v516 = vld [vmem:[%s3] sm:$0xff]
        %v517 = vld [vmem:[%s3 + $0x8] sm:$0xff]
        %519 = vset.pattern.permute.xlu0 0
        %520 = vperm.xlu0 %519, %v516
        %v521 = vpop.permute.xlu0 %520
        %524 = vset.pattern.permute.xlu0 0
        %525 = vperm.xlu0 %524, %v517
        %v526 = vpop.permute.xlu0 %525
        %vm528 = vcmask 195584
        %v530 = vsel %vm528, %v511, 0
        %v533 = vsel %vm528, %v512, 0
        %535 = vmatpush.msra.mxu0 0.0
        %536 = vmatpush.msra.mxu0 0.0
        %537 = vmatpush.msra.mxu0 0.0
        %538 = vmatpush.msra.mxu0 0.0
        %539 = vmatpush.msra.mxu0 0.0
        %540 = vmatpush.msra.mxu0 0.0
        %541 = vmatpush.msra.mxu0 0.0
        %542 = vmatpush.msra.mxu0 0.0
        %543 = vmatpush.msra.mxu0 0.0
        %544 = vmatpush.msra.mxu0 0.0
        %545 = vmatpush.msra.mxu0 0.0
        %546 = vmatpush.msra.mxu0 0.0
        %547 = vmatpush.msra.mxu0 0.0
        %548 = vmatpush.msra.mxu0 %v515
        %549 = vmatpush.msra.mxu0 %v514
        %550 = vmatpush.msra.mxu0 %v513
        %551 = vmatmul.f32.gmra.mxu0 %v530
        %v552 = vpop.f32.mrf.mxu0
        %v553 = vadd.f32 %v521, %v552
        %554 = vmatmul.f32.gmra.mxu0 %v533
        %v555 = vpop.f32.mrf.mxu0
        %v556 = vadd.f32 %v526, %v555
        %557 = vdwg.mxu0
        %vm558 = vcmask 523264
        %559 = vst.msk [vmem:[%s260] sm:$0xff] %vm558, %v553
        %560 = vst.msk [vmem:[%s260 + $0x8] sm:$0xff] %vm558, %v556
        %s561 = sand.u32 %s126, 1
        %s562 = scalar_lea.sflag [#allocation5], %s561
        %s563 = sand.u32 %s126, 1
        %s564 = smul.addr %s563, 16
        %s565 = scalar_lea.vmem [#allocation8], %s564
        // Predicated region
        $region45: #{tpu_custom_call.1} parent=35 // pred_check
          %p566 = pneg %p136
        $region46: #{tpu_custom_call.1} parent=35 // pred_check_branch
          %568 = sbr.rel (%p566) target = $region48
        $region47: #{tpu_custom_call.1} parent=35 // pred_region
          %570 = vsyncadd %s562, 0
          %s571 = smul.addr %s24, 2
          %s572 = smul.addr %s571, 8
          %s573 = scalar_lea.hbm %s4, %s572
          %s574 = sshll.u32 %s565, 4
          %s575 = int_to_ptr.vmem [resolvable:$true] %s574
          %s576 = sshll.u32 %s573, 4
          %s577 = int_to_ptr.hbm [resolvable:$true] %s576
          %582 = dma.vmem_to_hbm [thread:$0]  %s575, 256, %s577, %s562, 128, 128, 8
        $region48: #{tpu_custom_call.1} parent=35 // pred_fallthru
          _
      $region36: #{tpu_custom_call.1} parent=5 // pred_fallthru
        _
      %p583 = scmp.le.s32.totalorder 2, %s19
      // Predicated region
      $region49: #{tpu_custom_call.1} parent=5 // pred_check
        %p584 = pneg %p583
      $region50: #{tpu_custom_call.1} parent=5 // pred_check_branch
        %586 = sbr.rel (%p584) target = $region52
      $region51: #{tpu_custom_call.1} parent=5 // pred_region
        %s587 = ssub.s32 %s19, 2
        // Predicated region
        $region53: #{tpu_custom_call.1} parent=51 // pred_check
          %p588 = pneg %p142
        $region54: #{tpu_custom_call.1} parent=51 // pred_check_branch
          %590 = sbr.rel (%p588) target = $region56
        $region55: #{tpu_custom_call.1} parent=51 // pred_region
          %s591 = sand.u32 %s127, 1
          %s592 = scalar_lea.sflag [#allocation5], %s591
          %s593 = sand.u32 %s127, 1
          %s594 = smul.addr %s593, 16
          %s595 = scalar_lea.vmem [#allocation8], %s594
          %597 = dma.done %s592, 256
        $region56: #{tpu_custom_call.1} parent=51 // pred_fallthru
          _
      $region52: #{tpu_custom_call.1} parent=5 // pred_fallthru
        _
    $region6: #{tpu_custom_call.1} parent=1 // loop_footer
      %s23 = sadd.s32 1, %s19
    $region7: #{tpu_custom_call.1} parent=1 // loop_footer_branch
      %18 = sbr.rel target = $region3
    $region8: #{tpu_custom_call.1} parent=1 // loop_exit
      _
    %598 = vsyncpa [#allocation4], 1
    %s599 = scalar_lea.sflag [#allocation4], 1
    %600 = vsyncpa %s599, 1
    %601 = vsyncpa [#allocation7], 1
    %s602 = scalar_lea.sflag [#allocation7], 1
    %603 = vsyncpa %s602, 1
    %604 = vsyncpa [#allocation5], 1
    %s605 = scalar_lea.sflag [#allocation5], 1
    %606 = vsyncpa %s605, 1

</llo_original>
